<compile_context>
chip_gen: v6e
topology: v6e:2x2x1
jax: 0.10.0
libtpu: 0.0.40
codegen_flags: <defaults>
</compile_context>

<pallas_src>
import math

import jax
import jax.numpy as jnp
from jax.experimental import pallas as pl
from jax.experimental.pallas import tpu as pltpu

NUM_BASE_FEATURES = 1000
NUM_CLASSES = 6


def _round_up(x, m):
    return (x + m - 1) // m * m


def _gelu_linear_kernel(x_ref, w_ref, b_ref, o_ref):
    """o = GELU(x) @ w + b.

    GELU in the input dtype (bf16-native on v6e/v7x, f32 otherwise), matmul with
    bf16 operands and f32 accumulation, bias add in f32, bf16 store.
    """
    x = x_ref[...]                                   # (tb, F) in native dtype
    if x.dtype not in (jnp.float32, jnp.bfloat16):   # trace-time guard
        x = x.astype(jnp.float32)
    # tanh-approx GELU (EUP tanh slot; <~3e-4 from torch's exact-erf GELU,
    # below the fp16-autocast resolution of the reference forward).
    c = math.sqrt(2.0 / math.pi)
    g = 0.5 * x * (1.0 + jnp.tanh(c * (x + 0.044715 * (x * x * x))))
    acc = jnp.dot(g.astype(jnp.bfloat16), w_ref[...],
                  preferred_element_type=jnp.float32)
    o_ref[...] = (acc + b_ref[...]).astype(o_ref.dtype)


def make_crop_head(w, b, *, tb=None):
    """Pre-pack Linear weights once and return a jitted forward f(x) -> logits.

    w: (C, F) f32, b: (C,) f32.  Packed as (F, Cp) bf16 / (1, Cp) f32 with the
    class axis padded to a lane multiple (6 -> 128).  The feature axis is NOT
    padded: the kernel uses a full-extent K=1000 block.
    """
    C, F = w.shape
    Cp = _round_up(C, 128)
    w_p = jnp.pad(w.T, ((0, 0), (0, Cp - C))).astype(jnp.bfloat16)   # (F, Cp)
    b_p = jnp.pad(b, (0, Cp - C)).reshape(1, Cp).astype(jnp.float32)  # (1, Cp)

    @jax.jit
    def forward(x):
        B = x.shape[0]
        itemsize = jnp.dtype(x.dtype).itemsize
        # Bigger tiles when the input stream is bf16 (half the DMA bytes/row).
        tb_cap = tb if tb is not None else (1024 if itemsize <= 2 else 512)
        # Guarantee >= 2 grid steps for B >= 16 so both v7x TCs get work.
        rows = -(-B // 2) if B >= 16 else B
        tb_ = min(tb_cap, _round_up(rows, 8))

        # Pad batch only to a sublane multiple; the last grid block may be
        # partial (Pallas masks the out-of-range output rows, and padded /
        # garbage rows >= B are sliced off below — rows are independent).
        Bp = _round_up(B, 8)
        x_p = x if Bp == B else jnp.pad(x, ((0, Bp - B), (0, 0)))
        grid = (pl.cdiv(Bp, tb_),)

        cost = pl.CostEstimate(
            flops=2 * Bp * F * Cp,
            transcendentals=Bp * F,
            bytes_accessed=Bp * F * itemsize + w_p.size * 2 + b_p.size * 4
                           + Bp * Cp * 2,
        )

        out = pl.pallas_call(
            _gelu_linear_kernel,
            out_shape=jax.ShapeDtypeStruct((Bp, Cp), jnp.bfloat16),
            grid_spec=pltpu.PrefetchScalarGridSpec(
                num_scalar_prefetch=0,
                grid=grid,
                in_specs=[
                    # Full-extent feature block: last dim == array dim (legal),
                    # so no feature-axis padding / extra HBM pass is needed.
                    pl.BlockSpec((tb_, F), lambda i: (i, 0)),
                    pl.BlockSpec((F, Cp), lambda i: (0, 0)),   # resident weight
                    pl.BlockSpec((1, Cp), lambda i: (0, 0)),   # resident bias
                ],
                out_specs=pl.BlockSpec((tb_, Cp), lambda i: (i, 0)),
            ),
            compiler_params=pltpu.CompilerParams(
                dimension_semantics=("parallel",),
                vmem_limit_bytes=32 * 1024 * 1024,
            ),
            cost_estimate=cost,
        )(x_p, w_p, b_p)
        return out[:B, :C]

    return forward


if __name__ == "__main__":
    key = jax.random.PRNGKey(0)
    kw, kb, kx = jax.random.split(key, 3)

    # nn.Linear default init: U(-1/sqrt(fan_in), 1/sqrt(fan_in))
    bound = 1.0 / math.sqrt(NUM_BASE_FEATURES)
    w = jax.random.uniform(kw, (NUM_CLASSES, NUM_BASE_FEATURES), jnp.float32,
                           -bound, bound)
    b = jax.random.uniform(kb, (NUM_CLASSES,), jnp.float32, -bound, bound)
    x = jax.random.normal(kx, (2, NUM_BASE_FEATURES), jnp.float32)

    head = make_crop_head(w, b)

    # Small f32 batch (spec-sized).
    out = jax.block_until_ready(head(x))
    assert out.shape == (2, NUM_CLASSES), out.shape
    out32 = out.astype(jnp.float32)
    assert bool(jnp.all(jnp.isfinite(out32)))

    ref_tanh = jax.nn.gelu(x, approximate=True) @ w.T + b
    ref_erf = jax.nn.gelu(x, approximate=False) @ w.T + b     # torch default GELU
    assert bool(jnp.allclose(out32, ref_tanh, atol=5e-2, rtol=5e-2)), (
        float(jnp.max(jnp.abs(out32 - ref_tanh))))
    assert bool(jnp.allclose(out32, ref_erf, atol=5e-2, rtol=5e-2)), (
        float(jnp.max(jnp.abs(out32 - ref_erf))))

    # Larger bf16 batch: exercises the bf16 GELU path, multi-step grid and the
    # partial last block (B=37 -> Bp=40, two grid steps of 24 rows).
    x_big = jax.random.normal(jax.random.PRNGKey(1),
                              (37, NUM_BASE_FEATURES)).astype(jnp.bfloat16)
    out_big = jax.block_until_ready(head(x_big))
    assert out_big.shape == (37, NUM_CLASSES), out_big.shape
    ref_big = jax.nn.gelu(x_big.astype(jnp.float32), approximate=True) @ w.T + b
    assert bool(jnp.allclose(out_big.astype(jnp.float32), ref_big,
                             atol=1e-1, rtol=1e-1)), (
        float(jnp.max(jnp.abs(out_big.astype(jnp.float32) - ref_big))))

    print("KERNEL_OK")
</pallas_src>

<mosaic_0001>
module attributes {stable_mosaic.version = 11 : i64} {
  func.func @_gelu_linear_kernel(%arg0: i32, %arg1: memref<8x1000xf32, #tpu.memory_space<vmem>>, %arg2: memref<1000x128xbf16, #tpu.memory_space<vmem>>, %arg3: memref<1x128xf32, #tpu.memory_space<vmem>>, %arg4: memref<8x128xbf16, #tpu.memory_space<vmem>>) attributes {dimension_semantics = [#tpu.dimension_semantics<parallel>], iteration_bounds = array<i64: 1>, scalar_prefetch = 0 : i64, scratch_operands = 0 : i64, tpu.core_type = #tpu.core_type<tc>, window_params = [{transform_indices = @transform_0, window_bounds = array<i64: 8, 1000>}, {pipeline_mode = #tpu.pipeline_mode<synchronous>, transform_indices = @transform_1, window_bounds = array<i64: 1000, 128>}, {pipeline_mode = #tpu.pipeline_mode<synchronous>, transform_indices = @transform_2, window_bounds = array<i64: 1, 128>}, {transform_indices = @transform_3, window_bounds = array<i64: 8, 128>}]} {
    %c0 = arith.constant 0 : index
    %c0_0 = arith.constant 0 : index
    %0 = vector.load %arg1[%c0, %c0_0] : memref<8x1000xf32, #tpu.memory_space<vmem>>, vector<8x1000xf32>
    %cst = arith.constant 5.000000e-01 : f32
    %1 = vector.broadcast %cst : f32 to vector<8x1000xf32>
    %2 = arith.mulf %1, %0 : vector<8x1000xf32>
    %3 = arith.mulf %0, %0 : vector<8x1000xf32>
    %4 = arith.mulf %3, %0 : vector<8x1000xf32>
    %cst_1 = arith.constant 4.471500e-02 : f32
    %5 = vector.broadcast %cst_1 : f32 to vector<8x1000xf32>
    %6 = arith.mulf %5, %4 : vector<8x1000xf32>
    %7 = arith.addf %0, %6 : vector<8x1000xf32>
    %cst_2 = arith.constant 0.797884583 : f32
    %8 = vector.broadcast %cst_2 : f32 to vector<8x1000xf32>
    %9 = arith.mulf %8, %7 : vector<8x1000xf32>
    %10 = math.tanh %9 : vector<8x1000xf32>
    %cst_3 = arith.constant 1.000000e+00 : f32
    %11 = vector.broadcast %cst_3 : f32 to vector<8x1000xf32>
    %12 = arith.addf %11, %10 : vector<8x1000xf32>
    %13 = arith.mulf %2, %12 : vector<8x1000xf32>
    %14 = arith.truncf %13 : vector<8x1000xf32> to vector<8x1000xbf16>
    %c0_4 = arith.constant 0 : index
    %c0_5 = arith.constant 0 : index
    %15 = vector.load %arg2[%c0_4, %c0_5] : memref<1000x128xbf16, #tpu.memory_space<vmem>>, vector<1000x128xbf16>
    %cst_6 = arith.constant dense<0.000000e+00> : vector<8x128xf32>
    %16 = tpu.matmul %14, %15, %cst_6 {dimension_numbers = #tpu.dot_dimension_numbers<[1], [0], [0], [1], [0, 0, 1, 1], [], []>} : vector<8x1000xbf16>, vector<1000x128xbf16>, vector<8x128xf32> -> vector<8x128xf32>
    %c0_7 = arith.constant 0 : index
    %c0_8 = arith.constant 0 : index
    %17 = vector.load %arg3[%c0_7, %c0_8] : memref<1x128xf32, #tpu.memory_space<vmem>>, vector<1x128xf32>
    %18 = vector.broadcast %17 : vector<1x128xf32> to vector<8x128xf32>
    %19 = arith.addf %16, %18 : vector<8x128xf32>
    %20 = arith.truncf %19 : vector<8x128xf32> to vector<8x128xbf16>
    %c0_9 = arith.constant 0 : index
    %c0_10 = arith.constant 0 : index
    %21 = vector.load %arg4[%c0_9, %c0_10] : memref<8x128xbf16, #tpu.memory_space<vmem>>, vector<8x128xbf16>
    tpu.vector_store %arg4[%c0_9, %c0_10], %20 {strides = array<i32>} : memref<8x128xbf16, #tpu.memory_space<vmem>>, vector<8x128xbf16>,
    return
  }
  func.func @transform_0(%arg0: i32) -> (i32, i32) {
    %c0_i32 = arith.constant 0 : i32
    %c0_i32_0 = arith.constant 0 : i32
    return %arg0, %c0_i32 : i32, i32
  }
  func.func @transform_1(%arg0: i32) -> (i32, i32) {
    %c0_i32 = arith.constant 0 : i32
    %c0_i32_0 = arith.constant 0 : i32
    %c0_i32_1 = arith.constant 0 : i32
    return %c0_i32, %c0_i32_0 : i32, i32
  }
  func.func @transform_2(%arg0: i32) -> (i32, i32) {
    %c0_i32 = arith.constant 0 : i32
    %c0_i32_0 = arith.constant 0 : i32
    %c0_i32_1 = arith.constant 0 : i32
    return %c0_i32, %c0_i32_0 : i32, i32
  }
  func.func @transform_3(%arg0: i32) -> (i32, i32) {
    %c0_i32 = arith.constant 0 : i32
    %c0_i32_0 = arith.constant 0 : i32
    return %arg0, %c0_i32 : i32, i32
  }
}

</mosaic_0001>

<llo_original>
// kernel: forward.1
$region0: #{forward.1}
  #allocation0 [shape = 'u32[]', space=smem, size = 0x4, offset = 0x4, fixed_abs, tag = 'smem constant byte address 0x4 - core index']
  #allocation1 [shape = 'u32[144,128]{1,0:T(1,128)}', space=vmem, size = 0x12000, scoped, tag = 'internal scratch']
  %s0 = inlined_call_operand.vmem [shape: f32[8,1000], index: 0, kind: input, shape index: {}]
  %s1 = inlined_call_operand.hbm [shape: bf16[1000,128], index: 1, kind: input, shape index: {}]
  %s2 = inlined_call_operand.vmem [shape: f32[1,128], index: 2, kind: input, shape index: {}]
  %s3 = inlined_call_operand.vmem [shape: bf16[8,128], index: 3, kind: output, shape index: {}]
  %s4 = sld [smem:[#allocation0]]
  $region26: #{forward.1} parent=0
    _
  %s6 = ssub.s32 1, %s4
  %s7 = scalar_select 0, %s6, %s4
  $region1: #{forward.1} parent=0
    #allocation2 [shape = 'u8[256000]{0}', space=vmem, size = 0x3e800, scoped, tag = 'input window, operand 1, single buffered']
    #allocation3 [shape = 's32[1]{0}', space=sflag, size = 0x4, scoped, tag = 'scoped memory for forward.1']
    %8 = vsyncpa [#allocation3], 0
    // Predicated region
    $region2: #{forward.1} parent=1 // pred_check
      _
    $region3: #{forward.1} parent=1 // pred_check_branch
      %10 = sbr.rel (0) target = $region5
    $region4: #{forward.1} parent=1 // pred_region
      _
    $region5: #{forward.1} parent=1 // pred_fallthru
      _
    // Predicated region
    $region6: #{forward.1} parent=1 // pred_check
      _
    $region7: #{forward.1} parent=1 // pred_check_branch
      %12 = sbr.rel (0) target = $region9
    $region8: #{forward.1} parent=1 // pred_region
      %s14 = ssub.s32 8000, 8000
      %15 = vsyncadd [#allocation3], %s14
      %s16 = sshll.u32 [#allocation2], 4
      %s17 = int_to_ptr.vmem [resolvable:$true] %s16
      %22 = dma.hbm_to_vmem [thread:$0]  %s1, 8000, %s17, [#allocation3], 64, 64, 4
    $region9: #{forward.1} parent=1 // pred_fallthru
      _
    // Predicated region
    $region10: #{forward.1} parent=1 // pred_check
      _
    $region11: #{forward.1} parent=1 // pred_check_branch
      %24 = sbr.rel (0) target = $region13
    $region12: #{forward.1} parent=1 // pred_region
      _
    $region13: #{forward.1} parent=1 // pred_fallthru
      _
    // Predicated region
    $region14: #{forward.1} parent=1 // pred_check
      _
    $region15: #{forward.1} parent=1 // pred_check_branch
      %26 = sbr.rel (0) target = $region17
    $region16: #{forward.1} parent=1 // pred_region
      %27 = dma.done [#allocation3], 8000
    $region17: #{forward.1} parent=1 // pred_fallthru
      _
    %v29 = vld [vmem:[%s0] sm:$0xff]
    %v30 = vld [vmem:[%s0 + $0x8] sm:$0xff]
    %v31 = vld [vmem:[%s0 + $0x10] sm:$0xff]
    %v32 = vld [vmem:[%s0 + $0x18] sm:$0xff]
    %v33 = vld [vmem:[%s0 + $0x20] sm:$0xff]
    %v34 = vld [vmem:[%s0 + $0x28] sm:$0xff]
    %v35 = vld [vmem:[%s0 + $0x30] sm:$0xff]
    %v36 = vld [vmem:[%s0 + $0x38] sm:$0xff]
    %v37 = vmul.f32 %v29, 0.5
    %v38 = vmul.f32 %v30, 0.5
    %v39 = vmul.f32 %v31, 0.5
    %v40 = vmul.f32 %v32, 0.5
    %v41 = vmul.f32 %v33, 0.5
    %v42 = vmul.f32 %v34, 0.5
    %v43 = vmul.f32 %v35, 0.5
    %v44 = vmul.f32 %v36, 0.5
    %v45 = vmul.f32 %v29, %v29
    %v46 = vmul.f32 %v30, %v30
    %v47 = vmul.f32 %v31, %v31
    %v48 = vmul.f32 %v32, %v32
    %v49 = vmul.f32 %v33, %v33
    %v50 = vmul.f32 %v34, %v34
    %v51 = vmul.f32 %v35, %v35
    %v52 = vmul.f32 %v36, %v36
    %v53 = vmul.f32 %v45, %v29
    %v54 = vmul.f32 %v46, %v30
    %v55 = vmul.f32 %v47, %v31
    %v56 = vmul.f32 %v48, %v32
    %v57 = vmul.f32 %v49, %v33
    %v58 = vmul.f32 %v50, %v34
    %v59 = vmul.f32 %v51, %v35
    %v60 = vmul.f32 %v52, %v36
    %v61 = vmul.f32 %v53, 0.044715
    %v62 = vmul.f32 %v54, 0.044715
    %v63 = vmul.f32 %v55, 0.044715
    %v64 = vmul.f32 %v56, 0.044715
    %v65 = vmul.f32 %v57, 0.044715
    %v66 = vmul.f32 %v58, 0.044715
    %v67 = vmul.f32 %v59, 0.044715
    %v68 = vmul.f32 %v60, 0.044715
    %v69 = vadd.f32 %v29, %v61
    %v70 = vadd.f32 %v30, %v62
    %v71 = vadd.f32 %v31, %v63
    %v72 = vadd.f32 %v32, %v64
    %v73 = vadd.f32 %v33, %v65
    %v74 = vadd.f32 %v34, %v66
    %v75 = vadd.f32 %v35, %v67
    %v76 = vadd.f32 %v36, %v68
    %v77 = vmul.f32 %v69, 0.7978846
    %v78 = vmul.f32 %v70, 0.7978846
    %v79 = vmul.f32 %v71, 0.7978846
    %v80 = vmul.f32 %v72, 0.7978846
    %v81 = vmul.f32 %v73, 0.7978846
    %v82 = vmul.f32 %v74, 0.7978846
    %v83 = vmul.f32 %v75, 0.7978846
    %v84 = vmul.f32 %v76, 0.7978846
    %v85 = vtanh.pop %v77
    %v86 = vtanh.pop %v78
    %v87 = vtanh.pop %v79
    %v88 = vtanh.pop %v80
    %v89 = vtanh.pop %v81
    %v90 = vtanh.pop %v82
    %v91 = vtanh.pop %v83
    %v92 = vtanh.pop %v84
    %v93 = vadd.f32 %v85, 1.0
    %v94 = vadd.f32 %v86, 1.0
    %v95 = vadd.f32 %v87, 1.0
    %v96 = vadd.f32 %v88, 1.0
    %v97 = vadd.f32 %v89, 1.0
    %v98 = vadd.f32 %v90, 1.0
    %v99 = vadd.f32 %v91, 1.0
    %v100 = vadd.f32 %v92, 1.0
    %v101 = vmul.f32 %v37, %v93
    %v102 = vmul.f32 %v38, %v94
    %v103 = vmul.f32 %v39, %v95
    %v104 = vmul.f32 %v40, %v96
    %v105 = vmul.f32 %v41, %v97
    %v106 = vmul.f32 %v42, %v98
    %v107 = vmul.f32 %v43, %v99
    %v108 = vmul.f32 %v44, %v100
    %v109 = vpack.c.bf16 %v101, %v101
    %v110 = vpack.c.bf16 %v102, %v102
    %v111 = vpack.c.bf16 %v103, %v103
    %v112 = vpack.c.bf16 %v104, %v104
    %v113 = vpack.c.bf16 %v105, %v105
    %v114 = vpack.c.bf16 %v106, %v106
    %v115 = vpack.c.bf16 %v107, %v107
    %v116 = vpack.c.bf16 %v108, %v108
    %v117 = vld [vmem:[#allocation2] sm:$0xf]
    %v118 = vld [vmem:[#allocation2 + $0x4] sm:$0xf]
    %v119 = vld [vmem:[#allocation2 + $0x8] sm:$0xf]
    %v120 = vld [vmem:[#allocation2 + $0xc] sm:$0xf]
    %v121 = vld [vmem:[#allocation2 + $0x10] sm:$0xf]
    %v122 = vld [vmem:[#allocation2 + $0x14] sm:$0xf]
    %v123 = vld [vmem:[#allocation2 + $0x18] sm:$0xf]
    %v124 = vld [vmem:[#allocation2 + $0x1c] sm:$0xf]
    %v125 = vld [vmem:[#allocation2 + $0x20] sm:$0xf]
    %v126 = vld [vmem:[#allocation2 + $0x24] sm:$0xf]
    %v127 = vld [vmem:[#allocation2 + $0x28] sm:$0xf]
    %v128 = vld [vmem:[#allocation2 + $0x2c] sm:$0xf]
    %v129 = vld [vmem:[#allocation2 + $0x30] sm:$0xf]
    %v130 = vld [vmem:[#allocation2 + $0x34] sm:$0xf]
    %v131 = vld [vmem:[#allocation2 + $0x38] sm:$0xf]
    %v132 = vld [vmem:[#allocation2 + $0x3c] sm:$0xf]
    %v133 = vld [vmem:[#allocation2 + $0x40] sm:$0xf]
    %v134 = vld [vmem:[#allocation2 + $0x44] sm:$0xf]
    %v135 = vld [vmem:[#allocation2 + $0x48] sm:$0xf]
    %v136 = vld [vmem:[#allocation2 + $0x4c] sm:$0xf]
    %v137 = vld [vmem:[#allocation2 + $0x50] sm:$0xf]
    %v138 = vld [vmem:[#allocation2 + $0x54] sm:$0xf]
    %v139 = vld [vmem:[#allocation2 + $0x58] sm:$0xf]
    %v140 = vld [vmem:[#allocation2 + $0x5c] sm:$0xf]
    %v141 = vld [vmem:[#allocation2 + $0x60] sm:$0xf]
    %v142 = vld [vmem:[#allocation2 + $0x64] sm:$0xf]
    %v143 = vld [vmem:[#allocation2 + $0x68] sm:$0xf]
    %v144 = vld [vmem:[#allocation2 + $0x6c] sm:$0xf]
    %v145 = vld [vmem:[#allocation2 + $0x70] sm:$0xf]
    %v146 = vld [vmem:[#allocation2 + $0x74] sm:$0xf]
    %v147 = vld [vmem:[#allocation2 + $0x78] sm:$0xf]
    %v148 = vld [vmem:[#allocation2 + $0x7c] sm:$0xf]
    %v149 = vld [vmem:[#allocation2 + $0x80] sm:$0xf]
    %v150 = vld [vmem:[#allocation2 + $0x84] sm:$0xf]
    %v151 = vld [vmem:[#allocation2 + $0x88] sm:$0xf]
    %v152 = vld [vmem:[#allocation2 + $0x8c] sm:$0xf]
    %v153 = vld [vmem:[#allocation2 + $0x90] sm:$0xf]
    %v154 = vld [vmem:[#allocation2 + $0x94] sm:$0xf]
    %v155 = vld [vmem:[#allocation2 + $0x98] sm:$0xf]
    %v156 = vld [vmem:[#allocation2 + $0x9c] sm:$0xf]
    %v157 = vld [vmem:[#allocation2 + $0xa0] sm:$0xf]
    %v158 = vld [vmem:[#allocation2 + $0xa4] sm:$0xf]
    %v159 = vld [vmem:[#allocation2 + $0xa8] sm:$0xf]
    %v160 = vld [vmem:[#allocation2 + $0xac] sm:$0xf]
    %v161 = vld [vmem:[#allocation2 + $0xb0] sm:$0xf]
    %v162 = vld [vmem:[#allocation2 + $0xb4] sm:$0xf]
    %v163 = vld [vmem:[#allocation2 + $0xb8] sm:$0xf]
    %v164 = vld [vmem:[#allocation2 + $0xbc] sm:$0xf]
    %v165 = vld [vmem:[#allocation2 + $0xc0] sm:$0xf]
    %v166 = vld [vmem:[#allocation2 + $0xc4] sm:$0xf]
    %v167 = vld [vmem:[#allocation2 + $0xc8] sm:$0xf]
    %v168 = vld [vmem:[#allocation2 + $0xcc] sm:$0xf]
    %v169 = vld [vmem:[#allocation2 + $0xd0] sm:$0xf]
    %v170 = vld [vmem:[#allocation2 + $0xd4] sm:$0xf]
    %v171 = vld [vmem:[#allocation2 + $0xd8] sm:$0xf]
    %v172 = vld [vmem:[#allocation2 + $0xdc] sm:$0xf]
    %v173 = vld [vmem:[#allocation2 + $0xe0] sm:$0xf]
    %v174 = vld [vmem:[#allocation2 + $0xe4] sm:$0xf]
    %v175 = vld [vmem:[#allocation2 + $0xe8] sm:$0xf]
    %v176 = vld [vmem:[#allocation2 + $0xec] sm:$0xf]
    %v177 = vld [vmem:[#allocation2 + $0xf0] sm:$0xf]
    %v178 = vld [vmem:[#allocation2 + $0xf4] sm:$0xf]
    %v179 = vld [vmem:[#allocation2 + $0xf8] sm:$0xf]
    %v180 = vld [vmem:[#allocation2 + $0xfc] sm:$0xf]
    %v181 = vld [vmem:[#allocation2 + $0x100] sm:$0xf]
    %v182 = vld [vmem:[#allocation2 + $0x104] sm:$0xf]
    %v183 = vld [vmem:[#allocation2 + $0x108] sm:$0xf]
    %v184 = vld [vmem:[#allocation2 + $0x10c] sm:$0xf]
    %v185 = vld [vmem:[#allocation2 + $0x110] sm:$0xf]
    %v186 = vld [vmem:[#allocation2 + $0x114] sm:$0xf]
    %v187 = vld [vmem:[#allocation2 + $0x118] sm:$0xf]
    %v188 = vld [vmem:[#allocation2 + $0x11c] sm:$0xf]
    %v189 = vld [vmem:[#allocation2 + $0x120] sm:$0xf]
    %v190 = vld [vmem:[#allocation2 + $0x124] sm:$0xf]
    %v191 = vld [vmem:[#allocation2 + $0x128] sm:$0xf]
    %v192 = vld [vmem:[#allocation2 + $0x12c] sm:$0xf]
    %v193 = vld [vmem:[#allocation2 + $0x130] sm:$0xf]
    %v194 = vld [vmem:[#allocation2 + $0x134] sm:$0xf]
    %v195 = vld [vmem:[#allocation2 + $0x138] sm:$0xf]
    %v196 = vld [vmem:[#allocation2 + $0x13c] sm:$0xf]
    %v197 = vld [vmem:[#allocation2 + $0x140] sm:$0xf]
    %v198 = vld [vmem:[#allocation2 + $0x144] sm:$0xf]
    %v199 = vld [vmem:[#allocation2 + $0x148] sm:$0xf]
    %v200 = vld [vmem:[#allocation2 + $0x14c] sm:$0xf]
    %v201 = vld [vmem:[#allocation2 + $0x150] sm:$0xf]
    %v202 = vld [vmem:[#allocation2 + $0x154] sm:$0xf]
    %v203 = vld [vmem:[#allocation2 + $0x158] sm:$0xf]
    %v204 = vld [vmem:[#allocation2 + $0x15c] sm:$0xf]
    %v205 = vld [vmem:[#allocation2 + $0x160] sm:$0xf]
    %v206 = vld [vmem:[#allocation2 + $0x164] sm:$0xf]
    %v207 = vld [vmem:[#allocation2 + $0x168] sm:$0xf]
    %v208 = vld [vmem:[#allocation2 + $0x16c] sm:$0xf]
    %v209 = vld [vmem:[#allocation2 + $0x170] sm:$0xf]
    %v210 = vld [vmem:[#allocation2 + $0x174] sm:$0xf]
    %v211 = vld [vmem:[#allocation2 + $0x178] sm:$0xf]
    %v212 = vld [vmem:[#allocation2 + $0x17c] sm:$0xf]
    %v213 = vld [vmem:[#allocation2 + $0x180] sm:$0xf]
    %v214 = vld [vmem:[#allocation2 + $0x184] sm:$0xf]
    %v215 = vld [vmem:[#allocation2 + $0x188] sm:$0xf]
    %v216 = vld [vmem:[#allocation2 + $0x18c] sm:$0xf]
    %v217 = vld [vmem:[#allocation2 + $0x190] sm:$0xf]
    %v218 = vld [vmem:[#allocation2 + $0x194] sm:$0xf]
    %v219 = vld [vmem:[#allocation2 + $0x198] sm:$0xf]
    %v220 = vld [vmem:[#allocation2 + $0x19c] sm:$0xf]
    %v221 = vld [vmem:[#allocation2 + $0x1a0] sm:$0xf]
    %v222 = vld [vmem:[#allocation2 + $0x1a4] sm:$0xf]
    %v223 = vld [vmem:[#allocation2 + $0x1a8] sm:$0xf]
    %v224 = vld [vmem:[#allocation2 + $0x1ac] sm:$0xf]
    %v225 = vld [vmem:[#allocation2 + $0x1b0] sm:$0xf]
    %v226 = vld [vmem:[#allocation2 + $0x1b4] sm:$0xf]
    %v227 = vld [vmem:[#allocation2 + $0x1b8] sm:$0xf]
    %v228 = vld [vmem:[#allocation2 + $0x1bc] sm:$0xf]
    %v229 = vld [vmem:[#allocation2 + $0x1c0] sm:$0xf]
    %v230 = vld [vmem:[#allocation2 + $0x1c4] sm:$0xf]
    %v231 = vld [vmem:[#allocation2 + $0x1c8] sm:$0xf]
    %v232 = vld [vmem:[#allocation2 + $0x1cc] sm:$0xf]
    %v233 = vld [vmem:[#allocation2 + $0x1d0] sm:$0xf]
    %v234 = vld [vmem:[#allocation2 + $0x1d4] sm:$0xf]
    %v235 = vld [vmem:[#allocation2 + $0x1d8] sm:$0xf]
    %v236 = vld [vmem:[#allocation2 + $0x1dc] sm:$0xf]
    %v237 = vld [vmem:[#allocation2 + $0x1e0] sm:$0xf]
    %v238 = vld [vmem:[#allocation2 + $0x1e4] sm:$0xf]
    %v239 = vld [vmem:[#allocation2 + $0x1e8] sm:$0xf]
    %v240 = vld [vmem:[#allocation2 + $0x1ec] sm:$0xf]
    %v241 = vld [vmem:[#allocation2 + $0x1f0] sm:$0xf]
    %v242 = vld [vmem:[%s2] sm:$0x1]
    %v244 = vlaneseq
    %v245 = vshrl.u32 %v244, 7
    %v246 = vsub.s32 0, %v245
    %v247 = vrot.slane %v242, %v246
    %v374 = vunpack.c.l.b16 %v117
    %v375 = vunpack.c.l.b16 %v118
    %v376 = vunpack.c.l.b16 %v119
    %v377 = vunpack.c.l.b16 %v120
    %v378 = vunpack.c.l.b16 %v121
    %v379 = vunpack.c.l.b16 %v122
    %v380 = vunpack.c.l.b16 %v123
    %v381 = vunpack.c.l.b16 %v124
    %v382 = vunpack.c.l.b16 %v125
    %v383 = vunpack.c.l.b16 %v126
    %v384 = vunpack.c.l.b16 %v127
    %v385 = vunpack.c.l.b16 %v128
    %v386 = vunpack.c.l.b16 %v129
    %v387 = vunpack.c.l.b16 %v130
    %v388 = vunpack.c.l.b16 %v131
    %v389 = vunpack.c.l.b16 %v132
    %v390 = vunpack.c.l.b16 %v133
    %v391 = vunpack.c.l.b16 %v134
    %v392 = vunpack.c.l.b16 %v135
    %v393 = vunpack.c.l.b16 %v136
    %v394 = vunpack.c.l.b16 %v137
    %v395 = vunpack.c.l.b16 %v138
    %v396 = vunpack.c.l.b16 %v139
    %v397 = vunpack.c.l.b16 %v140
    %v398 = vunpack.c.l.b16 %v141
    %v399 = vunpack.c.l.b16 %v142
    %v400 = vunpack.c.l.b16 %v143
    %v401 = vunpack.c.l.b16 %v144
    %v402 = vunpack.c.l.b16 %v145
    %v403 = vunpack.c.l.b16 %v146
    %v404 = vunpack.c.l.b16 %v147
    %v405 = vunpack.c.l.b16 %v148
    %v406 = vunpack.c.l.b16 %v149
    %v407 = vunpack.c.l.b16 %v150
    %v408 = vunpack.c.l.b16 %v151
    %v409 = vunpack.c.l.b16 %v152
    %v410 = vunpack.c.l.b16 %v153
    %v411 = vunpack.c.l.b16 %v154
    %v412 = vunpack.c.l.b16 %v155
    %v413 = vunpack.c.l.b16 %v156
    %v414 = vunpack.c.l.b16 %v157
    %v415 = vunpack.c.l.b16 %v158
    %v416 = vunpack.c.l.b16 %v159
    %v417 = vunpack.c.l.b16 %v160
    %v418 = vunpack.c.l.b16 %v161
    %v419 = vunpack.c.l.b16 %v162
    %v420 = vunpack.c.l.b16 %v163
    %v421 = vunpack.c.l.b16 %v164
    %v422 = vunpack.c.l.b16 %v165
    %v423 = vunpack.c.l.b16 %v166
    %v424 = vunpack.c.l.b16 %v167
    %v425 = vunpack.c.l.b16 %v168
    %v426 = vunpack.c.l.b16 %v169
    %v427 = vunpack.c.l.b16 %v170
    %v428 = vunpack.c.l.b16 %v171
    %v429 = vunpack.c.l.b16 %v172
    %v430 = vunpack.c.l.b16 %v173
    %v431 = vunpack.c.l.b16 %v174
    %v432 = vunpack.c.l.b16 %v175
    %v433 = vunpack.c.l.b16 %v176
    %v434 = vunpack.c.l.b16 %v177
    %v435 = vunpack.c.l.b16 %v178
    %v436 = vunpack.c.l.b16 %v179
    %v437 = vunpack.c.l.b16 %v180
    %v438 = vunpack.c.l.b16 %v181
    %v439 = vunpack.c.l.b16 %v182
    %v440 = vunpack.c.l.b16 %v183
    %v441 = vunpack.c.l.b16 %v184
    %v442 = vunpack.c.l.b16 %v185
    %v443 = vunpack.c.l.b16 %v186
    %v444 = vunpack.c.l.b16 %v187
    %v445 = vunpack.c.l.b16 %v188
    %v446 = vunpack.c.l.b16 %v189
    %v447 = vunpack.c.l.b16 %v190
    %v448 = vunpack.c.l.b16 %v191
    %v449 = vunpack.c.l.b16 %v192
    %v450 = vunpack.c.l.b16 %v193
    %v451 = vunpack.c.l.b16 %v194
    %v452 = vunpack.c.l.b16 %v195
    %v453 = vunpack.c.l.b16 %v196
    %v454 = vunpack.c.l.b16 %v197
    %v455 = vunpack.c.l.b16 %v198
    %v456 = vunpack.c.l.b16 %v199
    %v457 = vunpack.c.l.b16 %v200
    %v458 = vunpack.c.l.b16 %v201
    %v459 = vunpack.c.l.b16 %v202
    %v460 = vunpack.c.l.b16 %v203
    %v461 = vunpack.c.l.b16 %v204
    %v462 = vunpack.c.l.b16 %v205
    %v463 = vunpack.c.l.b16 %v206
    %v464 = vunpack.c.l.b16 %v207
    %v465 = vunpack.c.l.b16 %v208
    %v466 = vunpack.c.l.b16 %v209
    %v467 = vunpack.c.l.b16 %v210
    %v468 = vunpack.c.l.b16 %v211
    %v469 = vunpack.c.l.b16 %v212
    %v470 = vunpack.c.l.b16 %v213
    %v471 = vunpack.c.l.b16 %v214
    %v472 = vunpack.c.l.b16 %v215
    %v473 = vunpack.c.l.b16 %v216
    %v474 = vunpack.c.l.b16 %v217
    %v475 = vunpack.c.l.b16 %v218
    %v476 = vunpack.c.l.b16 %v219
    %v477 = vunpack.c.l.b16 %v220
    %v478 = vunpack.c.l.b16 %v221
    %v479 = vunpack.c.l.b16 %v222
    %v480 = vunpack.c.l.b16 %v223
    %v481 = vunpack.c.l.b16 %v224
    %v482 = vunpack.c.l.b16 %v225
    %v483 = vunpack.c.l.b16 %v226
    %v484 = vunpack.c.l.b16 %v227
    %v485 = vunpack.c.l.b16 %v228
    %v486 = vunpack.c.l.b16 %v229
    %v487 = vunpack.c.l.b16 %v230
    %v488 = vunpack.c.l.b16 %v231
    %v489 = vunpack.c.l.b16 %v232
    %v490 = vunpack.c.l.b16 %v233
    %v491 = vunpack.c.l.b16 %v234
    %v492 = vunpack.c.l.b16 %v235
    %v493 = vunpack.c.l.b16 %v236
    %v494 = vunpack.c.l.b16 %v237
    %v495 = vunpack.c.l.b16 %v238
    %v496 = vunpack.c.l.b16 %v239
    %v497 = vunpack.c.l.b16 %v240
    %v498 = vunpack.c.l.b16 %v241
    %v499 = vpack.c.b16 %v375, %v374
    %v500 = vpack.c.b16 %v377, %v376
    %v501 = vpack.c.b16 %v379, %v378
    %v502 = vpack.c.b16 %v381, %v380
    %v503 = vpack.c.b16 %v383, %v382
    %v504 = vpack.c.b16 %v385, %v384
    %v505 = vpack.c.b16 %v387, %v386
    %v506 = vpack.c.b16 %v389, %v388
    %v507 = vpack.c.b16 %v391, %v390
    %v508 = vpack.c.b16 %v393, %v392
    %v509 = vpack.c.b16 %v395, %v394
    %v510 = vpack.c.b16 %v397, %v396
    %v511 = vpack.c.b16 %v399, %v398
    %v512 = vpack.c.b16 %v401, %v400
    %v513 = vpack.c.b16 %v403, %v402
    %v514 = vpack.c.b16 %v405, %v404
    %v515 = vpack.c.b16 %v407, %v406
    %v516 = vpack.c.b16 %v409, %v408
    %v517 = vpack.c.b16 %v411, %v410
    %v518 = vpack.c.b16 %v413, %v412
    %v519 = vpack.c.b16 %v415, %v414
    %v520 = vpack.c.b16 %v417, %v416
    %v521 = vpack.c.b16 %v419, %v418
    %v522 = vpack.c.b16 %v421, %v420
    %v523 = vpack.c.b16 %v423, %v422
    %v524 = vpack.c.b16 %v425, %v424
    %v525 = vpack.c.b16 %v427, %v426
    %v526 = vpack.c.b16 %v429, %v428
    %v527 = vpack.c.b16 %v431, %v430
    %v528 = vpack.c.b16 %v433, %v432
    %v529 = vpack.c.b16 %v435, %v434
    %v530 = vpack.c.b16 %v437, %v436
    %v531 = vpack.c.b16 %v439, %v438
    %v532 = vpack.c.b16 %v441, %v440
    %v533 = vpack.c.b16 %v443, %v442
    %v534 = vpack.c.b16 %v445, %v444
    %v535 = vpack.c.b16 %v447, %v446
    %v536 = vpack.c.b16 %v449, %v448
    %v537 = vpack.c.b16 %v451, %v450
    %v538 = vpack.c.b16 %v453, %v452
    %v539 = vpack.c.b16 %v455, %v454
    %v540 = vpack.c.b16 %v457, %v456
    %v541 = vpack.c.b16 %v459, %v458
    %v542 = vpack.c.b16 %v461, %v460
    %v543 = vpack.c.b16 %v463, %v462
    %v544 = vpack.c.b16 %v465, %v464
    %v545 = vpack.c.b16 %v467, %v466
    %v546 = vpack.c.b16 %v469, %v468
    %v547 = vpack.c.b16 %v471, %v470
    %v548 = vpack.c.b16 %v473, %v472
    %v549 = vpack.c.b16 %v475, %v474
    %v550 = vpack.c.b16 %v477, %v476
    %v551 = vpack.c.b16 %v479, %v478
    %v552 = vpack.c.b16 %v481, %v480
    %v553 = vpack.c.b16 %v483, %v482
    %v554 = vpack.c.b16 %v485, %v484
    %v555 = vpack.c.b16 %v487, %v486
    %v556 = vpack.c.b16 %v489, %v488
    %v557 = vpack.c.b16 %v491, %v490
    %v558 = vpack.c.b16 %v493, %v492
    %v559 = vpack.c.b16 %v495, %v494
    %v560 = vpack.c.b16 %v497, %v496
    %v561 = vpack.c.b16 %v498, %v498
    %vm624 = vcmask 850944
    %v626 = vsel %vm624, %v116, 0
    %vm628 = vcmask 1043456
    %v630 = vsel %vm628, %v561, 0
    %632 = vmatprep.subr.bf16.mxu0 0
    %633 = vmatpush1.bf16.msra.mxu0 %v506
    %634 = vmatprep.subr.bf16.mxu0 0
    %635 = vmatpush1.bf16.msra.mxu0 %v505
    %636 = vmatprep.subr.bf16.mxu0 0
    %637 = vmatpush1.bf16.msra.mxu0 %v504
    %638 = vmatprep.subr.bf16.mxu0 0
    %639 = vmatpush1.bf16.msra.mxu0 %v503
    %640 = vmatprep.subr.bf16.mxu0 0
    %641 = vmatpush1.bf16.msra.mxu0 %v502
    %642 = vmatprep.subr.bf16.mxu0 0
    %643 = vmatpush1.bf16.msra.mxu0 %v501
    %644 = vmatprep.subr.bf16.mxu0 0
    %645 = vmatpush1.bf16.msra.mxu0 %v500
    %646 = vmatprep.subr.bf16.mxu0 0
    %647 = vmatpush1.bf16.msra.mxu0 %v499
    %648 = vmatprep.subr.bf16.mxu0 0
    %649 = vmatpush2.bf16.msra.mxu0 %v514
    %650 = vmatprep.subr.bf16.mxu0 0
    %651 = vmatpush2.bf16.msra.mxu0 %v513
    %652 = vmatprep.subr.bf16.mxu0 0
    %653 = vmatpush2.bf16.msra.mxu0 %v512
    %654 = vmatprep.subr.bf16.mxu0 0
    %655 = vmatpush2.bf16.msra.mxu0 %v511
    %656 = vmatprep.subr.bf16.mxu0 0
    %657 = vmatpush2.bf16.msra.mxu0 %v510
    %658 = vmatprep.subr.bf16.mxu0 0
    %659 = vmatpush2.bf16.msra.mxu0 %v509
    %660 = vmatprep.subr.bf16.mxu0 0
    %661 = vmatpush2.bf16.msra.mxu0 %v508
    %662 = vmatprep.subr.bf16.mxu0 0
    %663 = vmatpush2.bf16.msra.mxu0 %v507
    %664 = vmatprep.mubr.bf16.mxu0 %v110
    %665 = vmatmul.mubr.bf16.gmra.mxu0 %v109
    %v666 = vpop.f32.mrf.mxu0
    %v667 = vadd.f32 %v247, %v666
    %v668 = vpop.f32.mrf.mxu0
    %v669 = vpop.f32.mrf.mxu0
    %v670 = vpop.f32.mrf.mxu0
    %671 = vdwg.mxu0
    %672 = vmatprep.subr.bf16.mxu0 0
    %673 = vmatpush1.bf16.msra.mxu0 %v522
    %674 = vmatprep.subr.bf16.mxu0 0
    %675 = vmatpush1.bf16.msra.mxu0 %v521
    %676 = vmatprep.subr.bf16.mxu0 0
    %677 = vmatpush1.bf16.msra.mxu0 %v520
    %678 = vmatprep.subr.bf16.mxu0 0
    %679 = vmatpush1.bf16.msra.mxu0 %v519
    %680 = vmatprep.subr.bf16.mxu0 0
    %681 = vmatpush1.bf16.msra.mxu0 %v518
    %682 = vmatprep.subr.bf16.mxu0 0
    %683 = vmatpush1.bf16.msra.mxu0 %v517
    %684 = vmatprep.subr.bf16.mxu0 0
    %685 = vmatpush1.bf16.msra.mxu0 %v516
    %686 = vmatprep.subr.bf16.mxu0 0
    %687 = vmatpush1.bf16.msra.mxu0 %v515
    %688 = vmatprep.subr.bf16.mxu0 0
    %689 = vmatpush2.bf16.msra.mxu0 %v530
    %690 = vmatprep.subr.bf16.mxu0 0
    %691 = vmatpush2.bf16.msra.mxu0 %v529
    %692 = vmatprep.subr.bf16.mxu0 0
    %693 = vmatpush2.bf16.msra.mxu0 %v528
    %694 = vmatprep.subr.bf16.mxu0 0
    %695 = vmatpush2.bf16.msra.mxu0 %v527
    %696 = vmatprep.subr.bf16.mxu0 0
    %697 = vmatpush2.bf16.msra.mxu0 %v526
    %698 = vmatprep.subr.bf16.mxu0 0
    %699 = vmatpush2.bf16.msra.mxu0 %v525
    %700 = vmatprep.subr.bf16.mxu0 0
    %701 = vmatpush2.bf16.msra.mxu0 %v524
    %702 = vmatprep.subr.bf16.mxu0 0
    %703 = vmatpush2.bf16.msra.mxu0 %v523
    %704 = vmatprep.mubr.bf16.mxu0 %v112
    %705 = vmatmul.mubr.bf16.gmra.mxu0 %v111
    %v706 = vpop.f32.mrf.mxu0
    %v707 = vadd.f32 %v667, %v706
    %v708 = vpop.f32.mrf.mxu0
    %v709 = vpop.f32.mrf.mxu0
    %v710 = vpop.f32.mrf.mxu0
    %711 = vdwg.mxu0
    %712 = vmatprep.subr.bf16.mxu0 0
    %713 = vmatpush1.bf16.msra.mxu0 %v538
    %714 = vmatprep.subr.bf16.mxu0 0
    %715 = vmatpush1.bf16.msra.mxu0 %v537
    %716 = vmatprep.subr.bf16.mxu0 0
    %717 = vmatpush1.bf16.msra.mxu0 %v536
    %718 = vmatprep.subr.bf16.mxu0 0
    %719 = vmatpush1.bf16.msra.mxu0 %v535
    %720 = vmatprep.subr.bf16.mxu0 0
    %721 = vmatpush1.bf16.msra.mxu0 %v534
    %722 = vmatprep.subr.bf16.mxu0 0
    %723 = vmatpush1.bf16.msra.mxu0 %v533
    %724 = vmatprep.subr.bf16.mxu0 0
    %725 = vmatpush1.bf16.msra.mxu0 %v532
    %726 = vmatprep.subr.bf16.mxu0 0
    %727 = vmatpush1.bf16.msra.mxu0 %v531
    %728 = vmatprep.subr.bf16.mxu0 0
    %729 = vmatpush2.bf16.msra.mxu0 %v546
    %730 = vmatprep.subr.bf16.mxu0 0
    %731 = vmatpush2.bf16.msra.mxu0 %v545
    %732 = vmatprep.subr.bf16.mxu0 0
    %733 = vmatpush2.bf16.msra.mxu0 %v544
    %734 = vmatprep.subr.bf16.mxu0 0
    %735 = vmatpush2.bf16.msra.mxu0 %v543
    %736 = vmatprep.subr.bf16.mxu0 0
    %737 = vmatpush2.bf16.msra.mxu0 %v542
    %738 = vmatprep.subr.bf16.mxu0 0
    %739 = vmatpush2.bf16.msra.mxu0 %v541
    %740 = vmatprep.subr.bf16.mxu0 0
    %741 = vmatpush2.bf16.msra.mxu0 %v540
    %742 = vmatprep.subr.bf16.mxu0 0
    %743 = vmatpush2.bf16.msra.mxu0 %v539
    %744 = vmatprep.mubr.bf16.mxu0 %v114
    %745 = vmatmul.mubr.bf16.gmra.mxu0 %v113
    %v746 = vpop.f32.mrf.mxu0
    %v747 = vadd.f32 %v707, %v746
    %v748 = vpop.f32.mrf.mxu0
    %v749 = vpop.f32.mrf.mxu0
    %v750 = vpop.f32.mrf.mxu0
    %751 = vdwg.mxu0
    %752 = vmatprep.subr.bf16.mxu0 0
    %753 = vmatpush1.bf16.msra.mxu0 %v554
    %754 = vmatprep.subr.bf16.mxu0 0
    %755 = vmatpush1.bf16.msra.mxu0 %v553
    %756 = vmatprep.subr.bf16.mxu0 0
    %757 = vmatpush1.bf16.msra.mxu0 %v552
    %758 = vmatprep.subr.bf16.mxu0 0
    %759 = vmatpush1.bf16.msra.mxu0 %v551
    %760 = vmatprep.subr.bf16.mxu0 0
    %761 = vmatpush1.bf16.msra.mxu0 %v550
    %762 = vmatprep.subr.bf16.mxu0 0
    %763 = vmatpush1.bf16.msra.mxu0 %v549
    %764 = vmatprep.subr.bf16.mxu0 0
    %765 = vmatpush1.bf16.msra.mxu0 %v548
    %766 = vmatprep.subr.bf16.mxu0 0
    %767 = vmatpush1.bf16.msra.mxu0 %v547
    %768 = vmatprep.subr.bf16.mxu0 0
    %769 = vmatpush2.bf16.msra.mxu0 0
    %770 = vmatprep.subr.bf16.mxu0 0
    %771 = vmatpush2.bf16.msra.mxu0 %v630
    %772 = vmatprep.subr.bf16.mxu0 0
    %773 = vmatpush2.bf16.msra.mxu0 %v560
    %774 = vmatprep.subr.bf16.mxu0 0
    %775 = vmatpush2.bf16.msra.mxu0 %v559
    %776 = vmatprep.subr.bf16.mxu0 0
    %777 = vmatpush2.bf16.msra.mxu0 %v558
    %778 = vmatprep.subr.bf16.mxu0 0
    %779 = vmatpush2.bf16.msra.mxu0 %v557
    %780 = vmatprep.subr.bf16.mxu0 0
    %781 = vmatpush2.bf16.msra.mxu0 %v556
    %782 = vmatprep.subr.bf16.mxu0 0
    %783 = vmatpush2.bf16.msra.mxu0 %v555
    %784 = vmatprep.mubr.bf16.mxu0 %v626
    %785 = vmatmul.mubr.bf16.gmra.mxu0 %v115
    %v786 = vpop.f32.mrf.mxu0
    %v787 = vadd.f32 %v747, %v786
    %v788 = vpop.f32.mrf.mxu0
    %v789 = vpop.f32.mrf.mxu0
    %v790 = vpop.f32.mrf.mxu0
    %791 = vdwg.mxu0
    %v792 = vpack.c.bf16 %v787, %v787
    %793 = vst [vmem:[%s3] sm:$0xf] %v792
    // Predicated region
    $region18: #{forward.1} parent=1 // pred_check
      _
    $region19: #{forward.1} parent=1 // pred_check_branch
      %795 = sbr.rel (0) target = $region21
    $region20: #{forward.1} parent=1 // pred_region
      _
    $region21: #{forward.1} parent=1 // pred_fallthru
      _
    // Predicated region
    $region22: #{forward.1} parent=1 // pred_check
      _
    $region23: #{forward.1} parent=1 // pred_check_branch
      %797 = sbr.rel (0) target = $region25
    $region24: #{forward.1} parent=1 // pred_region
      _
    $region25: #{forward.1} parent=1 // pred_fallthru
      _
    %798 = vsyncpa [#allocation3], 1

</llo_original>
